<compile_context>
chip_gen: v5e
topology: v5e:2x2
jax: 0.10.0
libtpu: 0.0.40
codegen_flags: <defaults>
</compile_context>

<pallas_src>
import jax
import jax.numpy as jnp
from jax.experimental import pallas as pl
from jax.experimental.pallas import tpu as pltpu


_LANE = 128
# ~2 MiB per tile: in+out, each double-buffered, is ~8 MiB of live VMEM —
# fits the default scoped-VMEM limit on every generation (incl. v7x's 64 MiB
# physical VMEM) while large enough to amortize the ~0.35 us/step overhead.
_TARGET_TILE_BYTES = 2 * 1024 * 1024
_MAX_LANE_ELEMS = 2048  # lane-dense slab width cap (multiple of 128)


def _copy_kernel(x_ref, o_ref):
    # Pure data movement: identity copy of the current VMEM tile.
    o_ref[...] = x_ref[...]


def _identity_copy_2d(x2d, tile_bytes):
    """Tiled, pipelined HBM->VMEM->HBM identity copy of a lane-dense slab."""
    rows, lane = x2d.shape
    itemsize = jnp.dtype(x2d.dtype).itemsize

    # Rows per tile: multiple of 8 (sublane rule), ~tile_bytes per tile.
    tile_r = max(8, (tile_bytes // (lane * itemsize)) // 8 * 8)
    if tile_r >= rows:
        tile_r = rows  # single block == full array extent (always legal)

    grid = (pl.cdiv(rows, tile_r),)

    return pl.pallas_call(
        _copy_kernel,
        out_shape=jax.ShapeDtypeStruct((rows, lane), x2d.dtype),
        grid_spec=pltpu.PrefetchScalarGridSpec(
            num_scalar_prefetch=0,
            grid=grid,
            in_specs=[pl.BlockSpec((tile_r, lane), lambda i: (i, 0))],
            out_specs=pl.BlockSpec((tile_r, lane), lambda i: (i, 0)),
        ),
        # Reuse the input HBM buffer for the output: no second allocation,
        # and XLA may elide the round-trip entirely.
        input_output_aliases={0: 0},
        compiler_params=pltpu.CompilerParams(
            dimension_semantics=("parallel",),  # shard row tiles across TCs (v7x)
            vmem_limit_bytes=32 << 20,
        ),
    )(x2d)


def reshape_forward(x, shape, *, tile_bytes=_TARGET_TILE_BYTES):
    """Pallas equivalent of Reshape(shape).forward(x): x.view(-1, C, D, H, W)."""
    C, D, H, W = shape
    inner = C * D * H * W
    total = x.size
    assert total % inner == 0, "input size must be divisible by C*D*H*W"
    n = total // inner
    out_shape = (n, C, D, H, W)

    if total % _LANE != 0:
        # A view is metadata-only; for non-128-divisible extents a Pallas copy
        # would need pad+mask for zero benefit, so keep it free.
        # TODO(synk): lane-padded masked-copy path if a kernel is ever mandated here.
        return jnp.reshape(x, out_shape)

    # Choose the widest lane (multiple of 128, <= cap) that keeps >= 8 sublanes
    # when possible -> unmasked, lane-dense DMAs.
    lane = _LANE
    while (total % (lane * 2) == 0
           and lane * 2 <= _MAX_LANE_ELEMS
           and total // (lane * 2) >= 8):
        lane *= 2
    rows = total // lane

    x2d = jnp.reshape(x, (rows, lane))        # metadata-only flatten
    out2d = _identity_copy_2d(x2d, tile_bytes)
    return jnp.reshape(out2d, out_shape)      # metadata-only view to (-1,C,D,H,W)


if __name__ == "__main__":
    target_shape = (4, 2, 8, 8)  # (C, D, H, W), inner = 512

    # 1) Small canonical case: batch=2, flattened features (4, 128).
    key = jax.random.PRNGKey(0)
    x = jax.random.normal(key, (2, 4, 2 * 8 * 8), dtype=jnp.float32)
    out = jax.block_until_ready(reshape_forward(x, target_shape))
    ref = jnp.reshape(x, (-1, *target_shape))
    assert out.shape == (2, 4, 2, 8, 8), out.shape
    assert out.dtype == x.dtype
    assert bool(jnp.array_equal(out, ref))

    # 2) Multi-tile grid (small tile override keeps the tensor tiny while
    #    exercising the pipelined multi-block path).
    x2 = jax.random.normal(jax.random.PRNGKey(0), (64, 4, 128), dtype=jnp.float32)
    out2 = jax.block_until_ready(
        reshape_forward(x2, target_shape, tile_bytes=8 * 2048 * 4))
    assert bool(jnp.array_equal(out2, jnp.reshape(x2, (-1, *target_shape))))

    # 3) Ragged last tile (rows not a multiple of the row-tile).
    x3 = jax.random.normal(jax.random.PRNGKey(0), (40, 4, 128), dtype=jnp.float32)
    out3 = jax.block_until_ready(
        reshape_forward(x3, target_shape, tile_bytes=8 * 2048 * 4))
    assert bool(jnp.array_equal(out3, jnp.reshape(x3, (-1, *target_shape))))

    print("KERNEL_OK")
</pallas_src>

<mosaic_0001>
module attributes {stable_mosaic.version = 11 : i64} {
  func.func @_copy_kernel(%arg0: i32, %arg1: memref<8x128xf32, #tpu.memory_space<vmem>>, %arg2: memref<8x128xf32, #tpu.memory_space<vmem>>) attributes {dimension_semantics = [#tpu.dimension_semantics<parallel>], iteration_bounds = array<i64: 1>, scalar_prefetch = 0 : i64, scratch_operands = 0 : i64, tpu.core_type = #tpu.core_type<tc>, window_params = [{transform_indices = @transform_0, window_bounds = array<i64: 8, 128>}, {transform_indices = @transform_1, window_bounds = array<i64: 8, 128>}]} {
    %c0 = arith.constant 0 : index
    %c0_0 = arith.constant 0 : index
    %0 = vector.load %arg1[%c0, %c0_0] : memref<8x128xf32, #tpu.memory_space<vmem>>, vector<8x128xf32>
    %c0_1 = arith.constant 0 : index
    %c0_2 = arith.constant 0 : index
    %1 = vector.load %arg2[%c0_1, %c0_2] : memref<8x128xf32, #tpu.memory_space<vmem>>, vector<8x128xf32>
    tpu.vector_store %arg2[%c0_1, %c0_2], %0 {strides = array<i32>} : memref<8x128xf32, #tpu.memory_space<vmem>>, vector<8x128xf32>,
    return
  }
  func.func @transform_0(%arg0: i32) -> (i32, i32) {
    %c0_i32 = arith.constant 0 : i32
    %c0_i32_0 = arith.constant 0 : i32
    return %arg0, %c0_i32 : i32, i32
  }
  func.func @transform_1(%arg0: i32) -> (i32, i32) {
    %c0_i32 = arith.constant 0 : i32
    %c0_i32_0 = arith.constant 0 : i32
    return %arg0, %c0_i32 : i32, i32
  }
}

</mosaic_0001>

<llo_original>
// kernel: tpu_custom_call.1
$region0: #{tpu_custom_call.1}
  #allocation0 [shape = 'u32[]', space=smem, size = 0x4, offset = 0x4, fixed_abs, tag = 'smem constant byte address 0x4 - core index']
  #allocation1 [shape = 'u32[72,128]{1,0:T(1,128)}', space=vmem, size = 0x9000, scoped, tag = 'internal scratch']
  %s0 = inlined_call_operand.hbm [shape: f32[8,128], index: 0, kind: input, shape index: {}, may-alias: {0,1}]
  %s1 = inlined_call_operand.hbm [shape: f32[8,128], index: 1, kind: output, shape index: {}, may-alias: {0,1}]
  %s2 = sld [smem:[#allocation0]]
  $region18: #{tpu_custom_call.1} parent=0
    _
  %s4 = ssub.s32 1, %s2
  %s5 = scalar_select 0, %s4, %s2
  $region1: #{tpu_custom_call.1} parent=0
    #allocation2 [shape = 'u8[4096]{0}', space=vmem, size = 0x1000, scoped, tag = 'input window, operand 0, single buffered']
    #allocation3 [shape = 's32[1]{0}', space=sflag, size = 0x4, scoped, tag = 'scoped memory for tpu_custom_call.1']
    #allocation4 [shape = 's32[1]{0}', space=sflag, size = 0x4, scoped, tag = 'scoped memory for tpu_custom_call.1']
    #allocation5 [shape = 'u8[4096]{0}', space=vmem, size = 0x1000, scoped, tag = 'output window, operand 0, single buffered']
    %6 = vsyncpa [#allocation3], 0
    %7 = vsyncpa [#allocation4], 0
    // Predicated region
    $region2: #{tpu_custom_call.1} parent=1 // pred_check
      _
    $region3: #{tpu_custom_call.1} parent=1 // pred_check_branch
      %9 = sbr.rel (0) target = $region5
    $region4: #{tpu_custom_call.1} parent=1 // pred_region
      %11 = vsyncadd [#allocation3], 0
      %s13 = sshll.u32 %s0, 4
      %s14 = int_to_ptr.hbm [resolvable:$true] %s13
      %s15 = sshll.u32 [#allocation2], 4
      %s16 = int_to_ptr.vmem [resolvable:$true] %s15
      %18 = dma.hbm_to_vmem [thread:$0]  %s14, 128, %s16, [#allocation3]
    $region5: #{tpu_custom_call.1} parent=1 // pred_fallthru
      _
    // Predicated region
    $region6: #{tpu_custom_call.1} parent=1 // pred_check
      _
    $region7: #{tpu_custom_call.1} parent=1 // pred_check_branch
      %20 = sbr.rel (0) target = $region9
    $region8: #{tpu_custom_call.1} parent=1 // pred_region
      %22 = dma.done [#allocation3], 128
    $region9: #{tpu_custom_call.1} parent=1 // pred_fallthru
      _
    %v23 = vld [vmem:[#allocation2] sm:$0xff]
    %24 = vst [vmem:[#allocation5] sm:$0xff] %v23
    // Predicated region
    $region10: #{tpu_custom_call.1} parent=1 // pred_check
      _
    $region11: #{tpu_custom_call.1} parent=1 // pred_check_branch
      %26 = sbr.rel (0) target = $region13
    $region12: #{tpu_custom_call.1} parent=1 // pred_region
      %28 = vsyncadd [#allocation4], 0
      %s30 = sshll.u32 [#allocation5], 4
      %s31 = int_to_ptr.vmem [resolvable:$true] %s30
      %s32 = sshll.u32 %s1, 4
      %s33 = int_to_ptr.hbm [resolvable:$true] %s32
      %35 = dma.vmem_to_hbm [thread:$0]  %s31, 128, %s33, [#allocation4]
    $region13: #{tpu_custom_call.1} parent=1 // pred_fallthru
      _
    // Predicated region
    $region14: #{tpu_custom_call.1} parent=1 // pred_check
      _
    $region15: #{tpu_custom_call.1} parent=1 // pred_check_branch
      %37 = sbr.rel (0) target = $region17
    $region16: #{tpu_custom_call.1} parent=1 // pred_region
      %39 = dma.done [#allocation4], 128
    $region17: #{tpu_custom_call.1} parent=1 // pred_fallthru
      _
    %40 = vsyncpa [#allocation3], 1
    %41 = vsyncpa [#allocation4], 1

</llo_original>
